<compile_context>
chip_gen: v5e
topology: v5e:2x2
jax: 0.10.0
libtpu: 0.0.40
codegen_flags: <defaults>
</compile_context>

<pallas_src>
import functools

import jax
import jax.numpy as jnp
from jax.experimental import pallas as pl
from jax.experimental.pallas import tpu as pltpu


def _cdiv(a, b):
    return -(-a // b)


def _round_up(a, b):
    return _cdiv(a, b) * b


def _lane_pad(n):
    # VMEM buffers pad the lane (last) dim to a multiple of 128.
    return _round_up(n, 128)


def _generation_budget():
    """(per-block byte budget, vmem_limit_bytes) per TPU generation."""
    try:
        kind = jax.devices()[0].device_kind.lower()
    except Exception:  # defensive: never fail tile selection on detection
        kind = ""
    if "v7" in kind:
        # v7x: only 64 MiB VMEM/TC -> keep double-buffered footprint <= ~32 MiB.
        return 12 * 1024 * 1024, 48 * 1024 * 1024
    if ("v5" in kind) or ("v6" in kind):
        # 128 MiB physical VMEM: larger blocks amortize ~0.35us/step overhead.
        return 16 * 1024 * 1024, 64 * 1024 * 1024
    # Unknown generation: conservative values that fit everywhere.
    return 12 * 1024 * 1024, 48 * 1024 * 1024


def _gap_kernel_single(x_ref, o_ref, *, inv_l):
    # Whole H*W extent in one tile: reduce + scale + store directly (no scratch).
    x = x_ref[...].astype(jnp.float32)
    o_ref[...] = (jnp.sum(x, axis=-1, keepdims=True) * inv_l).astype(o_ref.dtype)


def _gap_kernel_tiled(x_ref, o_ref, acc_ref, *, inv_l, col_tile, total_cols,
                      needs_mask):
    # x_ref: (tr, tl) slice of the (N*C, H*W) view, tl % 128 == 0.
    # acc_ref: (tr, 128) f32 lane-wise partial sum; reduced once in finalize.
    j = pl.program_id(1)
    last = pl.num_programs(1) - 1

    @pl.when(j == 0)
    def _init():
        acc_ref[...] = jnp.zeros_like(acc_ref)

    def _accumulate(x):
        # 128-lane-aligned slices -> pure VALU adds into the wide partial;
        # no per-tile cross-lane (XLU) reduction, no narrow accumulator update.
        p = acc_ref[...]
        for k in range(x.shape[1] // 128):
            p = p + x[:, k * 128:(k + 1) * 128]
        acc_ref[...] = p

    if needs_mask:
        # Gate the tail mask: only the final column tile pays iota/cmp/select.
        @pl.when(j != last)
        def _body():
            _accumulate(x_ref[...].astype(jnp.float32))

        @pl.when(j == last)
        def _tail():
            x = x_ref[...].astype(jnp.float32)
            col = jax.lax.broadcasted_iota(jnp.int32, x.shape, dimension=1)
            x = jnp.where(j * col_tile + col < total_cols, x, 0.0)
            _accumulate(x)
    else:
        _accumulate(x_ref[...].astype(jnp.float32))

    @pl.when(j == last)
    def _finalize():
        s = jnp.sum(acc_ref[...], axis=-1, keepdims=True)
        o_ref[...] = (s * inv_l).astype(o_ref.dtype)


def global_avg_pool2d(x_nchw, *, block_budget_bytes=None):
    """Equivalent of F.avg_pool2d(x, kernel_size=x.size()[2:]) for NCHW input."""
    N, C, H, W = x_nchw.shape
    M, L = N * C, H * W
    x2 = x_nchw.reshape(M, L)  # free: NCHW is already (N*C, H*W) row-major

    itemsize = jnp.dtype(x_nchw.dtype).itemsize
    budget, vmem_limit = _generation_budget()
    if block_budget_bytes is not None:
        budget = int(block_budget_bytes)

    # Per-row VMEM cost of one pipeline buffer: lane-padded input row plus the
    # lane-padded (tr, 1) output row (a 1-wide buffer still occupies 128 lanes).
    out_row_bytes = 128 * itemsize
    in_row_bytes_full = _lane_pad(L) * itemsize

    cost = pl.CostEstimate(
        flops=M * L,
        transcendentals=0,
        bytes_accessed=M * L * itemsize + M * itemsize,
    )

    if 8 * (in_row_bytes_full + out_row_bytes) <= budget:
        # Common case (small/medium H*W): whole reduction in one lane tile.
        tr_max = budget // (in_row_bytes_full + out_row_bytes)
        if tr_max >= M:
            tr = M
        else:
            tr_max = max(8, (tr_max // 8) * 8)
            n_row = _cdiv(M, tr_max)
            tr = min(tr_max, _round_up(_cdiv(M, n_row), 8))  # balanced row split
        grid = (_cdiv(M, tr),)

        out = pl.pallas_call(
            functools.partial(_gap_kernel_single, inv_l=1.0 / float(L)),
            out_shape=jax.ShapeDtypeStruct((M, 1), x_nchw.dtype),
            grid_spec=pltpu.PrefetchScalarGridSpec(
                num_scalar_prefetch=0,
                grid=grid,
                in_specs=[pl.BlockSpec((tr, L), lambda i: (i, 0))],
                out_specs=pl.BlockSpec((tr, 1), lambda i: (i, 0)),
            ),
            compiler_params=pltpu.CompilerParams(
                dimension_semantics=("parallel",),
                vmem_limit_bytes=vmem_limit,
            ),
            cost_estimate=cost,
        )(x2)
    else:
        # Huge H*W: tile the reduction on a trailing "arbitrary" axis with a
        # (tr, 128) f32 VMEM partial-sum accumulator.
        tr = M if M <= 256 else 256
        if tr < M:
            tr = max(8, (tr // 8) * 8)
        scratch_row_bytes = 128 * 4  # f32 accumulator row (single-buffered)
        max_tl = (budget - tr * (out_row_bytes + scratch_row_bytes)) // (tr * itemsize)
        max_tl = max(128, (max_tl // 128) * 128)
        n_col = _cdiv(L, max_tl)
        tl = min(max_tl, _round_up(_cdiv(L, n_col), 128))  # balanced column split
        needs_mask = (L % tl) != 0
        grid = (_cdiv(M, tr), _cdiv(L, tl))

        kernel = functools.partial(
            _gap_kernel_tiled,
            inv_l=1.0 / float(L),
            col_tile=tl,
            total_cols=L,
            needs_mask=needs_mask,
        )
        out = pl.pallas_call(
            kernel,
            out_shape=jax.ShapeDtypeStruct((M, 1), x_nchw.dtype),
            grid_spec=pltpu.PrefetchScalarGridSpec(
                num_scalar_prefetch=0,
                grid=grid,
                in_specs=[pl.BlockSpec((tr, tl), lambda i, j: (i, j))],
                out_specs=pl.BlockSpec((tr, 1), lambda i, j: (i, 0)),
                scratch_shapes=[pltpu.VMEM((tr, 128), jnp.float32)],
            ),
            compiler_params=pltpu.CompilerParams(
                dimension_semantics=("parallel", "arbitrary"),
                vmem_limit_bytes=vmem_limit,
            ),
            cost_estimate=cost,
        )(x2)

    return out.reshape(N, C, 1, 1)


if __name__ == "__main__":
    key = jax.random.PRNGKey(0)
    k1, k2, k3 = jax.random.split(key, 3)

    gap = jax.jit(global_avg_pool2d, static_argnames=("block_budget_bytes",))

    # Small NCHW feature map (single-column-tile fast path).
    x = jax.random.normal(k1, (2, 4, 16, 16), jnp.float32)
    out = jax.block_until_ready(gap(x))
    ref = jnp.mean(x, axis=(2, 3), keepdims=True)
    assert out.shape == (2, 4, 1, 1), out.shape
    assert jnp.allclose(out, ref, rtol=1e-5, atol=1e-5), \
        float(jnp.max(jnp.abs(out - ref)))

    # Rows not a multiple of 8, spatial not a multiple of 128 (still one tile).
    x2 = jax.random.normal(k2, (3, 5, 50, 50), jnp.float32)
    out2 = jax.block_until_ready(gap(x2))
    ref2 = jnp.mean(x2, axis=(2, 3), keepdims=True)
    assert out2.shape == (3, 5, 1, 1), out2.shape
    assert jnp.allclose(out2, ref2, rtol=1e-5, atol=1e-5), \
        float(jnp.max(jnp.abs(out2 - ref2)))

    # Exercise the column-tiled path (wide accumulator + gated tail mask) on a
    # small shape by shrinking the per-block byte budget.
    x3 = jax.random.normal(k3, (2, 4, 40, 40), jnp.float32)
    out3 = jax.block_until_ready(gap(x3, block_budget_bytes=32 * 1024))
    ref3 = jnp.mean(x3, axis=(2, 3), keepdims=True)
    assert out3.shape == (2, 4, 1, 1), out3.shape
    assert jnp.allclose(out3, ref3, rtol=1e-5, atol=1e-5), \
        float(jnp.max(jnp.abs(out3 - ref3)))

    print("KERNEL_OK")
</pallas_src>

<mosaic_0001>
module attributes {stable_mosaic.version = 11 : i64} {
  func.func @_gap_kernel_single(%arg0: i32, %arg1: memref<8x256xf32, #tpu.memory_space<vmem>>, %arg2: memref<8x1xf32, #tpu.memory_space<vmem>>) attributes {dimension_semantics = [#tpu.dimension_semantics<parallel>], iteration_bounds = array<i64: 1>, scalar_prefetch = 0 : i64, scratch_operands = 0 : i64, tpu.core_type = #tpu.core_type<tc>, window_params = [{transform_indices = @transform_0, window_bounds = array<i64: 8, 256>}, {transform_indices = @transform_1, window_bounds = array<i64: 8, 1>}]} {
    %c0 = arith.constant 0 : index
    %c0_0 = arith.constant 0 : index
    %0 = vector.load %arg1[%c0, %c0_0] : memref<8x256xf32, #tpu.memory_space<vmem>>, vector<8x256xf32>
    %cst = arith.constant dense<0.000000e+00> : vector<8xf32>
    %1 = vector.multi_reduction <add>, %0, %cst [1] : vector<8x256xf32> to vector<8xf32>
    %2 = vector.shape_cast %1 : vector<8xf32> to vector<8x1xf32>
    %cst_1 = arith.constant 3.906250e-03 : f32
    %3 = vector.broadcast %cst_1 : f32 to vector<8x1xf32>
    %4 = arith.mulf %2, %3 : vector<8x1xf32>
    %c0_2 = arith.constant 0 : index
    %c0_3 = arith.constant 0 : index
    %5 = vector.load %arg2[%c0_2, %c0_3] : memref<8x1xf32, #tpu.memory_space<vmem>>, vector<8x1xf32>
    tpu.vector_store %arg2[%c0_2, %c0_3], %4 {strides = array<i32>} : memref<8x1xf32, #tpu.memory_space<vmem>>, vector<8x1xf32>,
    return
  }
  func.func @transform_0(%arg0: i32) -> (i32, i32) {
    %c0_i32 = arith.constant 0 : i32
    %c0_i32_0 = arith.constant 0 : i32
    return %arg0, %c0_i32 : i32, i32
  }
  func.func @transform_1(%arg0: i32) -> (i32, i32) {
    %c0_i32 = arith.constant 0 : i32
    %c0_i32_0 = arith.constant 0 : i32
    return %arg0, %c0_i32 : i32, i32
  }
}

</mosaic_0001>

<llo_original>
// kernel: global_avg_pool2d.1
$region0: #{global_avg_pool2d.1}
  #allocation0 [shape = 'u32[]', space=smem, size = 0x4, offset = 0x4, fixed_abs, tag = 'smem constant byte address 0x4 - core index']
  #allocation1 [shape = 'u32[72,128]{1,0:T(1,128)}', space=vmem, size = 0x9000, scoped, tag = 'internal scratch']
  %s0 = inlined_call_operand.vmem [shape: f32[8,256], index: 0, kind: input, shape index: {}]
  %s1 = inlined_call_operand.vmem [shape: f32[8,1], index: 1, kind: output, shape index: {}]
  %s2 = sld [smem:[#allocation0]]
  $region14: #{global_avg_pool2d.1} parent=0
    _
  %s4 = ssub.s32 1, %s2
  %s5 = scalar_select 0, %s4, %s2
  // Predicated region
  $region2: #{global_avg_pool2d.1} parent=0 // pred_check
    _
  $region3: #{global_avg_pool2d.1} parent=0 // pred_check_branch
    %7 = sbr.rel (0) target = $region5
  $region4: #{global_avg_pool2d.1} parent=0 // pred_region
    _
  $region5: #{global_avg_pool2d.1} parent=0 // pred_fallthru
    _
  %v8 = vld [vmem:[%s0] sm:$0xff]
  %v9 = vld [vmem:[%s0 + $0x8] sm:$0xff]
  %v10 = vadd.f32 %v8, %v9
  %11 = vadd.xlane.f32.xlu0 %v10
  %v12 = vpop.xlane.xlu0 %11
  %v13 = vmul.f32 %v12, 0.00390625
  %vm14 = vcmask 7168
  %15 = vst.msk [vmem:[%s1] sm:$0xff] %vm14, %v13
  // Predicated region
  $region6: #{global_avg_pool2d.1} parent=0 // pred_check
    _
  $region7: #{global_avg_pool2d.1} parent=0 // pred_check_branch
    %17 = sbr.rel (0) target = $region9
  $region8: #{global_avg_pool2d.1} parent=0 // pred_region
    _
  $region9: #{global_avg_pool2d.1} parent=0 // pred_fallthru
    _
  // Predicated region
  $region10: #{global_avg_pool2d.1} parent=0 // pred_check
    _
  $region11: #{global_avg_pool2d.1} parent=0 // pred_check_branch
    %19 = sbr.rel (0) target = $region13
  $region12: #{global_avg_pool2d.1} parent=0 // pred_region
    _
  $region13: #{global_avg_pool2d.1} parent=0 // pred_fallthru
    _

</llo_original>
